<compile_context>
chip_gen: v7x
topology: tpu7x:2x2x1
jax: 0.10.0
libtpu: 0.0.40
codegen_flags: <defaults>
</compile_context>

<pallas_src>
import jax
import jax.numpy as jnp
from jax.experimental import pallas as pl
from jax.experimental.pallas import tpu as pltpu


def _round_up(x, m):
    return ((x + m - 1) // m) * m


def _a2m_kernel(hs_ref, w_ref, b_ref, out_ref, acc_ref):
    """Grid = (n_tiles, n_layers); axis 1 (layers) is the reduction axis.

    hs_ref : (TILE_N, H)       current layer's hidden-state tile (bf16 stream)
    w_ref  : (H, OUT_PAD) f32  fused Linear weight ((W_in^T @ W_out^T)/L, padded)
    b_ref  : (1, OUT_PAD) f32  fused bias (b_in @ W_out^T + b_out, padded)
    out_ref: (TILE_N, OUT_PAD) output tile (resident across the layer axis)
    acc_ref: (TILE_N, H) f32   running sum of hidden states across layers
    """
    layer = pl.program_id(1)

    @pl.when(layer == 0)
    def _():
        acc_ref[...] = jnp.zeros_like(acc_ref)

    # sum(embeddings.hidden_states) accumulated in f32 (VPU add, hidden
    # behind the bf16 hidden-state DMA).
    acc_ref[...] += hs_ref[...].astype(jnp.float32)

    @pl.when(layer == pl.num_programs(1) - 1)
    def _():
        # Fused in_fn + out_fn (1/L already folded into w_ref):
        #   y = mean_hs @ W_comb + b_comb  =  sum_hs @ (W_comb / L) + b_comb
        out = jnp.dot(acc_ref[...], w_ref[...],
                      preferred_element_type=jnp.float32)
        out_ref[...] = (out + b_ref[...]).astype(out_ref.dtype)


def audio2mesh_forward(hidden_states, w_in, b_in, w_out, b_out,
                       *, tile_n=1024, stream_dtype=jnp.bfloat16):
    """hidden_states: (L, B, T, H) stack of encoder hidden states.

    w_in : (latent_dim, H), b_in : (latent_dim,)   -- PyTorch Linear layout
    w_out: (out_dim, latent_dim), b_out: (out_dim,)

    Returns (B, T, out_dim) float32, matching `forward(...)[0]` of the PyTorch
    module with `only_last_fetures=False`.
    """
    L, B, T, H = hidden_states.shape
    out_dim = w_out.shape[0]
    N = B * T

    # ---- Fuse the two Linears in f32 (keeps tight tolerance) ----------------
    # y = (x @ W_in^T + b_in) @ W_out^T + b_out
    #   = x @ (W_in^T @ W_out^T) + (b_in @ W_out^T + b_out)
    # and the 1/L of the layer mean is folded into the combined weight.
    w_comb = jnp.dot(w_in.T.astype(jnp.float32),
                     w_out.T.astype(jnp.float32)) * (1.0 / L)    # (H, out_dim)
    b_comb = (jnp.dot(b_in.astype(jnp.float32),
                      w_out.T.astype(jnp.float32))
              + b_out.astype(jnp.float32))                       # (out_dim,)

    # Lane-dense output: pad out_dim up to a multiple of 128.
    out_pad = _round_up(out_dim, 128)
    w_comb = jnp.pad(w_comb, ((0, 0), (0, out_pad - out_dim)))
    b_comb = jnp.pad(b_comb, (0, out_pad - out_dim)).reshape(1, out_pad)

    # ---- Pick the row-tile size under a VMEM budget --------------------------
    hs_itemsize = jnp.dtype(stream_dtype).itemsize

    def _vmem_bytes(tn):
        return (2 * tn * H * hs_itemsize        # double-buffered hidden-state tile
                + tn * H * 4                    # f32 accumulator scratch
                + 2 * tn * out_pad * 4          # double-buffered output tile
                + 2 * (H * out_pad + out_pad) * 4)  # fused weight + bias

    # Shrink the row tile if a huge H / out_dim would blow the (v7x) VMEM cap.
    while tile_n > 256 and _vmem_bytes(tile_n) > (40 << 20):
        tile_n //= 2

    # 16-row granularity covers bf16 sublane packing (and f32's 8).
    tile_n = min(tile_n, _round_up(N, 16))
    n_pad = _round_up(N, tile_n)
    n_tiles = n_pad // tile_n

    hs_flat = hidden_states.reshape(L, N, H).astype(stream_dtype)
    if n_pad != N:
        hs_flat = jnp.pad(hs_flat, ((0, 0), (0, n_pad - N), (0, 0)))

    vmem_limit = min(int(_vmem_bytes(tile_n) * 1.5) + (4 << 20), 64 << 20)

    cost = pl.CostEstimate(
        flops=2 * n_pad * H * out_pad,
        transcendentals=0,
        bytes_accessed=(L * n_pad * H * hs_itemsize
                        + (H * out_pad + out_pad) * 4
                        + n_pad * out_pad * 4),
    )

    out = pl.pallas_call(
        _a2m_kernel,
        out_shape=jax.ShapeDtypeStruct((n_pad, out_pad), jnp.float32),
        grid_spec=pltpu.PrefetchScalarGridSpec(
            num_scalar_prefetch=0,
            grid=(n_tiles, L),
            in_specs=[
                # hidden states: one (layer, row-tile) block per step; layer
                # dim squeezed out of the kernel view.
                pl.BlockSpec((None, tile_n, H), lambda n, l: (l, n, 0)),
                # fused weight / bias: same block every step -> fetched once.
                pl.BlockSpec((H, out_pad), lambda n, l: (0, 0)),
                pl.BlockSpec((1, out_pad), lambda n, l: (0, 0)),
            ],
            # Output tile stays resident across the layer (reduction) axis.
            out_specs=pl.BlockSpec((tile_n, out_pad), lambda n, l: (n, 0)),
            scratch_shapes=[pltpu.VMEM((tile_n, H), jnp.float32)],
        ),
        compiler_params=pltpu.CompilerParams(
            dimension_semantics=("parallel", "arbitrary"),
            vmem_limit_bytes=vmem_limit,
        ),
        cost_estimate=cost,
    )(hs_flat, w_comb, b_comb)

    return out[:N, :out_dim].reshape(B, T, out_dim)


def reference_forward(hidden_states, w_in, b_in, w_out, b_out,
                      stream_dtype=jnp.bfloat16):
    """Pure-JAX reference of the same math (PyTorch semantics), with the same
    bf16 streaming of hidden states and f32 accumulation/compute."""
    hs = hidden_states.astype(stream_dtype).astype(jnp.float32)
    mean_hs = jnp.mean(hs, axis=0)                                # (B, T, H)
    layer_in = mean_hs @ w_in.T.astype(jnp.float32) + b_in.astype(jnp.float32)
    out = layer_in @ w_out.T.astype(jnp.float32) + b_out.astype(jnp.float32)
    return out


if __name__ == "__main__":
    # Small, module-consistent shapes.
    num_hidden_states = 5      # wav2vec2 num_hidden_layers=4 -> 5 hidden states
    batch = 2
    seq_len = 8                # label.shape[1]
    hidden_size = 32           # Wav2Vec2Config.hidden_size (scaled down)
    latent_dim = 16
    out_dim = 24

    key = jax.random.PRNGKey(0)
    k_hs, k_win, k_bin, k_wout, k_bout = jax.random.split(key, 5)

    # Synthetic encoder hidden states (stand-in for Wav2Vec2Model outputs).
    hidden_states = jax.random.normal(
        k_hs, (num_hidden_states, batch, seq_len, hidden_size), jnp.float32)

    # in_fn: default nn.Linear-style init (deterministic here via PRNG).
    w_in = jax.random.normal(k_win, (latent_dim, hidden_size), jnp.float32) * 0.05
    b_in = jax.random.normal(k_bin, (latent_dim,), jnp.float32) * 0.05
    # The module zero-inits out_fn; use nonzero values here so the second
    # Linear path is actually exercised by the correctness check.
    w_out = jax.random.normal(k_wout, (out_dim, latent_dim), jnp.float32) * 0.05
    b_out = jax.random.normal(k_bout, (out_dim,), jnp.float32) * 0.05

    out = audio2mesh_forward(hidden_states, w_in, b_in, w_out, b_out)
    out = jax.block_until_ready(out)

    ref = reference_forward(hidden_states, w_in, b_in, w_out, b_out)
    assert out.shape == (batch, seq_len, out_dim), out.shape
    max_err = float(jnp.max(jnp.abs(out - ref)))
    assert jnp.allclose(out, ref, atol=2e-5, rtol=1e-4), \
        f"mismatch vs reference (max |err| = {max_err})"

    print("KERNEL_OK")
</pallas_src>

<mosaic_0001>
module attributes {stable_mosaic.version = 11 : i64} {
  func.func @_a2m_kernel(%arg0: i32, %arg1: i32, %arg2: memref<1x16x32xbf16, #tpu.memory_space<vmem>>, %arg3: memref<32x128xf32, #tpu.memory_space<vmem>>, %arg4: memref<1x128xf32, #tpu.memory_space<vmem>>, %arg5: memref<16x128xf32, #tpu.memory_space<vmem>>, %arg6: memref<16x32xf32, #tpu.memory_space<vmem>>) attributes {dimension_semantics = [#tpu.dimension_semantics<parallel>, #tpu.dimension_semantics<arbitrary>], iteration_bounds = array<i64: 1, 5>, scalar_prefetch = 0 : i64, scratch_operands = 1 : i64, tpu.core_type = #tpu.core_type<tc>, window_params = [{transform_indices = @transform_0, window_bounds = array<i64: 1, 16, 32>}, {pipeline_mode = #tpu.pipeline_mode<synchronous>, transform_indices = @transform_1, window_bounds = array<i64: 32, 128>}, {pipeline_mode = #tpu.pipeline_mode<synchronous>, transform_indices = @transform_2, window_bounds = array<i64: 1, 128>}, {transform_indices = @transform_3, window_bounds = array<i64: 16, 128>}]} {
    %c0_i32 = arith.constant 0 : i32
    %0 = arith.cmpi eq, %arg1, %c0_i32 : i32
    %1 = arith.extui %0 : i1 to i32
    %c0_i32_0 = arith.constant 0 : i32
    %2 = arith.cmpi ne, %1, %c0_i32_0 : i32
    scf.if %2 {
      %cst = arith.constant 0.000000e+00 : f32
      %12 = vector.broadcast %cst : f32 to vector<16x32xf32>
      %c0_8 = arith.constant 0 : index
      %c0_9 = arith.constant 0 : index
      %13 = vector.load %arg6[%c0_8, %c0_9] : memref<16x32xf32, #tpu.memory_space<vmem>>, vector<16x32xf32>
      tpu.vector_store %arg6[%c0_8, %c0_9], %12 {strides = array<i32>} : memref<16x32xf32, #tpu.memory_space<vmem>>, vector<16x32xf32>,
    } else {
    }
    %c0 = arith.constant 0 : index
    %c0_1 = arith.constant 0 : index
    %3 = vector.load %arg6[%c0, %c0_1] : memref<16x32xf32, #tpu.memory_space<vmem>>, vector<16x32xf32>
    %c0_2 = arith.constant 0 : index
    %c0_3 = arith.constant 0 : index
    %c0_4 = arith.constant 0 : index
    %4 = vector.load %arg2[%c0_2, %c0_3, %c0_4] : memref<1x16x32xbf16, #tpu.memory_space<vmem>>, vector<1x16x32xbf16>
    %5 = vector.shape_cast %4 : vector<1x16x32xbf16> to vector<16x32xbf16>
    %6 = arith.extf %5 : vector<16x32xbf16> to vector<16x32xf32>
    %7 = arith.addf %3, %6 : vector<16x32xf32>
    %c0_5 = arith.constant 0 : index
    %c0_6 = arith.constant 0 : index
    %8 = vector.load %arg6[%c0_5, %c0_6] : memref<16x32xf32, #tpu.memory_space<vmem>>, vector<16x32xf32>
    tpu.vector_store %arg6[%c0_5, %c0_6], %7 {strides = array<i32>} : memref<16x32xf32, #tpu.memory_space<vmem>>, vector<16x32xf32>,
    %c4_i32 = arith.constant 4 : i32
    %9 = arith.cmpi eq, %arg1, %c4_i32 : i32
    %10 = arith.extui %9 : i1 to i32
    %c0_i32_7 = arith.constant 0 : i32
    %11 = arith.cmpi ne, %10, %c0_i32_7 : i32
    scf.if %11 {
      %c0_8 = arith.constant 0 : index
      %c0_9 = arith.constant 0 : index
      %12 = vector.load %arg6[%c0_8, %c0_9] : memref<16x32xf32, #tpu.memory_space<vmem>>, vector<16x32xf32>
      %c0_10 = arith.constant 0 : index
      %c0_11 = arith.constant 0 : index
      %13 = vector.load %arg3[%c0_10, %c0_11] : memref<32x128xf32, #tpu.memory_space<vmem>>, vector<32x128xf32>
      %cst = arith.constant dense<0.000000e+00> : vector<16x128xf32>
      %14 = tpu.matmul %12, %13, %cst {dimension_numbers = #tpu.dot_dimension_numbers<[1], [0], [0], [1], [0, 0, 1, 1], [], []>} : vector<16x32xf32>, vector<32x128xf32>, vector<16x128xf32> -> vector<16x128xf32>
      %c0_12 = arith.constant 0 : index
      %c0_13 = arith.constant 0 : index
      %15 = vector.load %arg4[%c0_12, %c0_13] : memref<1x128xf32, #tpu.memory_space<vmem>>, vector<1x128xf32>
      %16 = vector.broadcast %15 : vector<1x128xf32> to vector<16x128xf32>
      %17 = arith.addf %14, %16 : vector<16x128xf32>
      %c0_14 = arith.constant 0 : index
      %c0_15 = arith.constant 0 : index
      %18 = vector.load %arg5[%c0_14, %c0_15] : memref<16x128xf32, #tpu.memory_space<vmem>>, vector<16x128xf32>
      tpu.vector_store %arg5[%c0_14, %c0_15], %17 {strides = array<i32>} : memref<16x128xf32, #tpu.memory_space<vmem>>, vector<16x128xf32>,
    } else {
    }
    return
  }
  func.func @transform_0(%arg0: i32, %arg1: i32) -> (i32, i32, i32) {
    %c0_i32 = arith.constant 0 : i32
    %c0_i32_0 = arith.constant 0 : i32
    return %arg1, %arg0, %c0_i32 : i32, i32, i32
  }
  func.func @transform_1(%arg0: i32, %arg1: i32) -> (i32, i32) {
    %c0_i32 = arith.constant 0 : i32
    %c0_i32_0 = arith.constant 0 : i32
    %c0_i32_1 = arith.constant 0 : i32
    return %c0_i32, %c0_i32_0 : i32, i32
  }
  func.func @transform_2(%arg0: i32, %arg1: i32) -> (i32, i32) {
    %c0_i32 = arith.constant 0 : i32
    %c0_i32_0 = arith.constant 0 : i32
    %c0_i32_1 = arith.constant 0 : i32
    return %c0_i32, %c0_i32_0 : i32, i32
  }
  func.func @transform_3(%arg0: i32, %arg1: i32) -> (i32, i32) {
    %c0_i32 = arith.constant 0 : i32
    %c0_i32_0 = arith.constant 0 : i32
    return %arg0, %c0_i32 : i32, i32
  }
}

</mosaic_0001>

<llo_original>
// kernel: tpu_custom_call.1
$region0: #{tpu_custom_call.1}
  #allocation0 [shape = 'u32[]', space=smem, size = 0x4, offset = 0x4, fixed_abs, tag = 'smem constant byte address 0x4 - core index']
  #allocation1 [shape = 'u32[144,128]{1,0:T(1,128)}', space=vmem, size = 0x12000, scoped, tag = 'internal scratch']
  #allocation2 [shape = 'f32[16,32]{1,0:T(8,128)}', space=vmem, size = 0x2000, scoped, tag = 'scratch operand']
  %s0 = inlined_call_operand.hbm [shape: bf16[5,16,32], index: 0, kind: input, shape index: {}]
  %s1 = inlined_call_operand.hbm [shape: f32[32,128], index: 1, kind: input, shape index: {}]
  %s2 = inlined_call_operand.vmem [shape: f32[1,128], index: 2, kind: input, shape index: {}]
  %s3 = inlined_call_operand.hbm [shape: f32[16,128], index: 3, kind: output, shape index: {}]
  %s4 = sld [smem:[#allocation0]]
  $region61: #{tpu_custom_call.1} parent=0
    _
  %s6 = ssub.s32 1, %s4
  %s7 = scalar_select 0, %s6, %s4
  $region1: #{tpu_custom_call.1} parent=0
    #allocation3 [shape = 'u8[8192]{0}', space=vmem, size = 0x2000, scoped, tag = 'input window, operand 0']
    #allocation4 [shape = 's32[2]{0}', space=sflag, size = 0x8, scoped, tag = 'scoped memory for tpu_custom_call.1']
    #allocation5 [shape = 's32[2]{0}', space=sflag, size = 0x8, scoped, tag = 'scoped memory for tpu_custom_call.1']
    #allocation6 [shape = 'u8[16384]{0}', space=vmem, size = 0x4000, scoped, tag = 'input window, operand 1, single buffered']
    #allocation7 [shape = 's32[1]{0}', space=sflag, size = 0x4, scoped, tag = 'scoped memory for tpu_custom_call.1']
    #allocation8 [shape = 'u8[8192]{0}', space=vmem, size = 0x2000, scoped, tag = 'output window, operand 0, single buffered']
    %8 = vsyncpa [#allocation4], 0
    %s9 = scalar_lea.sflag [#allocation4], 1
    %10 = vsyncpa %s9, 0
    %11 = vsyncpa [#allocation7], 0
    %12 = vsyncpa [#allocation5], 0
    loop: start=0, step=1, limit=7
    $region2: #{tpu_custom_call.1} parent=1 // loop_pre_header
      _
    $region3: #{tpu_custom_call.1} parent=1 // loop_header
      %s14 = sphi 0, %s18
      %p15 = scmp.ge.s32.totalorder %s14, 7
      %s21 = sphi 0, %s33
      %s22 = sphi 0, %s29
      %s23 = sphi 0, %s21
      %s24 = sphi 0, %s22
      %s25 = sphi 0, %s23
      %s26 = sphi 0, %s24
      %s38 = sphi 0, %s40
      %s41 = sphi 0, %s38
      %s42 = sphi 0, %s41
      %s58 = sphi 0, %s42
      %s62 = sphi 0, %s62
      %s64 = sphi 0, %s62
      %s65 = sphi 0, %s64
      %s79 = sphi 0, %s65
      %s83 = sphi 0, %s83
      %s85 = sphi 0, %s83
      %s86 = sphi 0, %s85
      %s100 = sphi 0, %s86
      %s106 = sphi 0, %s108
      %s109 = sphi 0, %s106
      %s110 = sphi 0, %s109
      %s126 = sphi 0, %s110
    $region4: #{tpu_custom_call.1} parent=1 // loop_header_branch
      %17 = sbr.rel (%p15) target = $region8
    $region5: #{tpu_custom_call.1} parent=1 // loop_body
      %s19 = ssub.s32 %s14, 1
      %s20 = ssub.s32 %s14, 2
      %s27 = sadd.s32 1, %s22
      %p28 = scmp.ge.s32.totalorder %s27, 5
      %s29 = scalar_select %p28, 0, %s27
      %s30 = sadd.s32 1, %s21
      %s31 = scalar_select %p28, %s30, %s21
      %p32 = scmp.ge.s32.totalorder %s31, 1
      %s33 = scalar_select %p32, 0, %s31
      %s34 = ssub.s32 %s22, %s29
      %s35 = ssub.s32 %s21, %s33
      %s36 = sor.u32 %s34, %s35
      %p37 = scmp.eq.s32.totalorder %s36, 0
      %s39 = sadd.s32 %s38, 1
      %s40 = scalar_select %p37, %s38, %s39
      %p43 = pneg %p37
      %p44 = scmp.eq.s32.totalorder %s14, 4
      %p45 = por %p43, %p44
      %p46 = scmp.ne.s32.totalorder %s38, %s41
      %p47 = scmp.eq.s32.totalorder %s14, 0
      %p48 = por %p46, %p47
      %p49 = scmp.ne.s32.totalorder %s38, %s41
      %p50 = scmp.eq.s32.totalorder %s19, 4
      %p51 = por %p49, %p50
      %p52 = scmp.ne.s32.totalorder %s41, %s42
      %p53 = scmp.eq.s32.totalorder %s19, 0
      %p54 = por %p52, %p53
      %p55 = scmp.ne.s32.totalorder %s41, %s42
      %p56 = scmp.eq.s32.totalorder %s20, 4
      %p57 = por %p55, %p56
      %p59 = scmp.ne.s32.totalorder %s42, %s58
      %p60 = scmp.eq.s32.totalorder %s20, 0
      %p61 = por %p59, %p60
      %s63 = sadd.s32 %s62, 1
      %p66 = scmp.eq.s32.totalorder %s14, 4
      %p67 = scmp.ne.s32.totalorder %s62, %s64
      %p68 = scmp.eq.s32.totalorder %s14, 0
      %p69 = por %p67, %p68
      %p70 = scmp.ne.s32.totalorder %s62, %s64
      %p71 = scmp.eq.s32.totalorder %s19, 4
      %p72 = por %p70, %p71
      %p73 = scmp.ne.s32.totalorder %s64, %s65
      %p74 = scmp.eq.s32.totalorder %s19, 0
      %p75 = por %p73, %p74
      %p76 = scmp.ne.s32.totalorder %s64, %s65
      %p77 = scmp.eq.s32.totalorder %s20, 4
      %p78 = por %p76, %p77
      %p80 = scmp.ne.s32.totalorder %s65, %s79
      %p81 = scmp.eq.s32.totalorder %s20, 0
      %p82 = por %p80, %p81
      %s84 = sadd.s32 %s83, 1
      %p87 = scmp.eq.s32.totalorder %s14, 4
      %p88 = scmp.ne.s32.totalorder %s83, %s85
      %p89 = scmp.eq.s32.totalorder %s14, 0
      %p90 = por %p88, %p89
      %p91 = scmp.ne.s32.totalorder %s83, %s85
      %p92 = scmp.eq.s32.totalorder %s19, 4
      %p93 = por %p91, %p92
      %p94 = scmp.ne.s32.totalorder %s85, %s86
      %p95 = scmp.eq.s32.totalorder %s19, 0
      %p96 = por %p94, %p95
      %p97 = scmp.ne.s32.totalorder %s85, %s86
      %p98 = scmp.eq.s32.totalorder %s20, 4
      %p99 = por %p97, %p98
      %p101 = scmp.ne.s32.totalorder %s86, %s100
      %p102 = scmp.eq.s32.totalorder %s20, 0
      %p103 = por %p101, %p102
      %s104 = ssub.s32 %s21, %s33
      %p105 = scmp.eq.s32.totalorder %s104, 0
      %s107 = sadd.s32 %s106, 1
      %s108 = scalar_select %p105, %s106, %s107
      %p111 = pneg %p105
      %p112 = scmp.eq.s32.totalorder %s14, 4
      %p113 = por %p111, %p112
      %p114 = scmp.ne.s32.totalorder %s106, %s109
      %p115 = scmp.eq.s32.totalorder %s14, 0
      %p116 = por %p114, %p115
      %p117 = scmp.ne.s32.totalorder %s106, %s109
      %p118 = scmp.eq.s32.totalorder %s19, 4
      %p119 = por %p117, %p118
      %p120 = scmp.ne.s32.totalorder %s109, %s110
      %p121 = scmp.eq.s32.totalorder %s19, 0
      %p122 = por %p120, %p121
      %p123 = scmp.ne.s32.totalorder %s109, %s110
      %p124 = scmp.eq.s32.totalorder %s20, 4
      %p125 = por %p123, %p124
      %p127 = scmp.ne.s32.totalorder %s110, %s126
      %p128 = scmp.eq.s32.totalorder %s20, 0
      %p129 = por %p127, %p128
      %p130 = scmp.le.s32.totalorder 1, %s14
      %p131 = scmp.lt.s32.totalorder %s14, 6
      %p132 = pnand %p130, %p131
      %p133 = pneg %p132
      // Predicated region
      $region9: #{tpu_custom_call.1} parent=5 // pred_check
        _
      $region10: #{tpu_custom_call.1} parent=5 // pred_check_branch
        %135 = sbr.rel (%p132) target = $region12
      $region11: #{tpu_custom_call.1} parent=5 // pred_region
        %s136 = ssub.s32 %s14, 1
        // Predicated region
        $region13: #{tpu_custom_call.1} parent=11 // pred_check
          %p137 = pneg %p75
        $region14: #{tpu_custom_call.1} parent=11 // pred_check_branch
          %139 = sbr.rel (%p137) target = $region16
        $region15: #{tpu_custom_call.1} parent=11 // pred_region
          %s141 = ssub.s32 512, 512
          %142 = vsyncadd [#allocation7], %s141
          %s143 = sshll.u32 [#allocation6], 4
          %s144 = int_to_ptr.vmem [resolvable:$true] %s143
          %149 = dma.hbm_to_vmem [thread:$0]  %s1, 512, %s144, [#allocation7], 128, 128, 8
        $region16: #{tpu_custom_call.1} parent=11 // pred_fallthru
          _
        // Predicated region
        $region17: #{tpu_custom_call.1} parent=11 // pred_check
          %p150 = pneg %p96
        $region18: #{tpu_custom_call.1} parent=11 // pred_check_branch
          %152 = sbr.rel (%p150) target = $region20
        $region19: #{tpu_custom_call.1} parent=11 // pred_region
          _
        $region20: #{tpu_custom_call.1} parent=11 // pred_fallthru
          _
      $region12: #{tpu_custom_call.1} parent=5 // pred_fallthru
        _
      %p153 = scmp.lt.s32.totalorder %s14, 5
      // Predicated region
      $region21: #{tpu_custom_call.1} parent=5 // pred_check
        %p154 = pneg %p153
      $region22: #{tpu_custom_call.1} parent=5 // pred_check_branch
        %156 = sbr.rel (%p154) target = $region24
      $region23: #{tpu_custom_call.1} parent=5 // pred_region
        // Predicated region
        $region25: #{tpu_custom_call.1} parent=23 // pred_check
          %p157 = pneg %p48
        $region26: #{tpu_custom_call.1} parent=23 // pred_check_branch
          %159 = sbr.rel (%p157) target = $region28
        $region27: #{tpu_custom_call.1} parent=23 // pred_region
          %s160 = sand.u32 %s38, 1
          %s161 = scalar_lea.sflag [#allocation4], %s160
          %s162 = sand.u32 %s38, 1
          %s163 = smul.addr %s162, 8
          %s164 = scalar_lea.vmem [#allocation3], %s163
          %s165 = smul.u32 2, %s21
          %s167 = ssub.s32 128, 128
          %168 = vsyncadd %s161, %s167
          %s169 = smul.addr %s22, 2
          %s170 = sadd.s32 %s165, %s169
          %s171 = smul.addr %s170, 64
          %s172 = scalar_lea.hbm %s0, %s171
          %s173 = sshll.u32 %s164, 4
          %s174 = int_to_ptr.vmem [resolvable:$true] %s173
          %179 = dma.hbm_to_vmem [thread:$0]  %s172, 128, %s174, %s161, 64, 64, 4
        $region28: #{tpu_custom_call.1} parent=23 // pred_fallthru
          _
      $region24: #{tpu_custom_call.1} parent=5 // pred_fallthru
        _
      %p180 = scmp.le.s32.totalorder 1, %s14
      %p181 = scmp.lt.s32.totalorder %s14, 6
      %p182 = pnand %p180, %p181
      %p183 = pneg %p182
      // Predicated region
      $region29: #{tpu_custom_call.1} parent=5 // pred_check
        _
      $region30: #{tpu_custom_call.1} parent=5 // pred_check_branch
        %185 = sbr.rel (%p182) target = $region32
      $region31: #{tpu_custom_call.1} parent=5 // pred_region
        %s186 = ssub.s32 %s14, 1
        %s187 = sand.u32 %s41, 1
        %s188 = scalar_lea.sflag [#allocation4], %s187
        %s189 = sand.u32 %s41, 1
        %s190 = smul.addr %s189, 8
        %s191 = scalar_lea.vmem [#allocation3], %s190
        // Predicated region
        $region33: #{tpu_custom_call.1} parent=31 // pred_check
          %p192 = pneg %p54
        $region34: #{tpu_custom_call.1} parent=31 // pred_check_branch
          %194 = sbr.rel (%p192) target = $region36
        $region35: #{tpu_custom_call.1} parent=31 // pred_region
          %195 = dma.done %s188, 128
        $region36: #{tpu_custom_call.1} parent=31 // pred_fallthru
          _
        // Predicated region
        $region37: #{tpu_custom_call.1} parent=31 // pred_check
          %p196 = pneg %p75
        $region38: #{tpu_custom_call.1} parent=31 // pred_check_branch
          %198 = sbr.rel (%p196) target = $region40
        $region39: #{tpu_custom_call.1} parent=31 // pred_region
          %199 = dma.done [#allocation7], 512
        $region40: #{tpu_custom_call.1} parent=31 // pred_fallthru
          _
        %s200 = sand.u32 %s41, 1
        %s201 = scalar_lea.sflag [#allocation4], %s200
        %s202 = sand.u32 %s41, 1
        %s203 = smul.addr %s202, 8
        %s204 = scalar_lea.vmem [#allocation3], %s203
        %p205 = pneg %p54
        %p206 = pneg %p51
        %p207 = pneg %p75
        %p208 = pneg %p72
        %p209 = pneg %p96
        %p210 = pneg %p93
        %p211 = pneg %p122
        %p212 = pneg %p119
        %s213 = smul.u32 2, %s23
        %s214 = smul.u32 2, %s23
        %p215 = scmp.eq.s32.totalorder %s24, 0
        // Predicated region
        $region41: #{tpu_custom_call.1} parent=31 // pred_check
          %p216 = pneg %p215
        $region42: #{tpu_custom_call.1} parent=31 // pred_check_branch
          %218 = sbr.rel (%p216) target = $region44
        $region43: #{tpu_custom_call.1} parent=31 // pred_region
          %vm219 = vcmask 261120
          %220 = vst.msk [vmem:[#allocation2] sm:$0xff] %vm219, 0.0
          %221 = vst.msk [vmem:[#allocation2 + $0x8] sm:$0xff] %vm219, 0.0
        $region44: #{tpu_custom_call.1} parent=31 // pred_fallthru
          _
        %v222 = vld [vmem:[#allocation2] sm:$0xff]
        %v223 = vld [vmem:[#allocation2 + $0x8] sm:$0xff]
        %v224 = vld [vmem:[%s191] sm:$0xf]
        %v225 = vld [vmem:[%s191 + $0x4] sm:$0xf]
        %v226 = vunpack.c.l.bf16 %v224
        %v227 = vunpack.c.l.bf16 %v225
        %v228 = vadd.f32 %v222, %v226
        %v229 = vadd.f32 %v223, %v227
        %vm230 = vcmask 261120
        %231 = vst.msk [vmem:[#allocation2] sm:$0xff] %vm230, %v228
        %232 = vst.msk [vmem:[#allocation2 + $0x8] sm:$0xff] %vm230, %v229
        %p233 = scmp.eq.s32.totalorder %s24, 4
        // Predicated region
        $region45: #{tpu_custom_call.1} parent=31 // pred_check
          %p234 = pneg %p233
        $region46: #{tpu_custom_call.1} parent=31 // pred_check_branch
          %236 = sbr.rel (%p234) target = $region48
        $region47: #{tpu_custom_call.1} parent=31 // pred_region
          %v237 = vld [vmem:[#allocation2] sm:$0xff]
          %v238 = vld [vmem:[#allocation2 + $0x8] sm:$0xff]
          %v239 = vld [vmem:[#allocation6] sm:$0xff]
          %v240 = vld [vmem:[#allocation6 + $0x8] sm:$0xff]
          %v241 = vld [vmem:[#allocation6 + $0x10] sm:$0xff]
          %v242 = vld [vmem:[#allocation6 + $0x18] sm:$0xff]
          %v243 = vld [vmem:[%s2] sm:$0x1]
          %v245 = vlaneseq
          %v246 = vshrl.u32 %v245, 7
          %v247 = vsub.s32 0, %v246
          %v248 = vrot.slane %v243, %v247
          %v251 = vsel %vm230, %v237, 0
          %v254 = vsel %vm230, %v238, 0
          %256 = vmatprep.subr.mxu0 0.0
          %257 = vmatpush1.msra.mxu0 %v239
          %258 = vmatprep.subr.mxu0 0.0
          %259 = vmatpush1.msra.mxu0 %v240
          %260 = vmatprep.subr.mxu0 0.0
          %261 = vmatpush1.msra.mxu0 %v241
          %262 = vmatprep.subr.mxu0 0.0
          %263 = vmatpush1.msra.mxu0 %v242
          %264 = vmatprep.subr.mxu0 0.0
          %265 = vmatpush1.msra.mxu0 0.0
          %266 = vmatprep.subr.mxu0 0.0
          %267 = vmatpush1.msra.mxu0 0.0
          %268 = vmatprep.subr.mxu0 0.0
          %269 = vmatpush1.msra.mxu0 0.0
          %270 = vmatprep.subr.mxu0 0.0
          %271 = vmatpush1.msra.mxu0 0.0
          %272 = vmatprep.subr.mxu0 0.0
          %273 = vmatpush1.msra.mxu0 0.0
          %274 = vmatprep.subr.mxu0 0.0
          %275 = vmatpush1.msra.mxu0 0.0
          %276 = vmatprep.subr.mxu0 0.0
          %277 = vmatpush1.msra.mxu0 0.0
          %278 = vmatprep.subr.mxu0 0.0
          %279 = vmatpush1.msra.mxu0 0.0
          %280 = vmatprep.subr.mxu0 0.0
          %281 = vmatpush1.msra.mxu0 0.0
          %282 = vmatprep.subr.mxu0 0.0
          %283 = vmatpush1.msra.mxu0 0.0
          %284 = vmatprep.subr.mxu0 0.0
          %285 = vmatpush1.msra.mxu0 0.0
          %286 = vmatprep.subr.mxu0 0.0
          %287 = vmatpush1.msra.mxu0 0.0
          %288 = vmatprep.subr.mxu0 0.0
          %289 = vmatpush1.msra.mxu0 0.0
          %290 = vmatprep.subr.mxu0 0.0
          %291 = vmatpush1.msra.mxu0 0.0
          %292 = vmatprep.subr.mxu0 0.0
          %293 = vmatpush1.msra.mxu0 0.0
          %294 = vmatprep.subr.mxu0 0.0
          %295 = vmatpush1.msra.mxu0 0.0
          %296 = vmatprep.subr.mxu0 0.0
          %297 = vmatpush1.msra.mxu0 0.0
          %298 = vmatprep.subr.mxu0 0.0
          %299 = vmatpush1.msra.mxu0 0.0
          %300 = vmatprep.subr.mxu0 0.0
          %301 = vmatpush1.msra.mxu0 0.0
          %302 = vmatprep.subr.mxu0 0.0
          %303 = vmatpush1.msra.mxu0 0.0
          %304 = vmatprep.subr.mxu0 0.0
          %305 = vmatpush1.msra.mxu0 0.0
          %306 = vmatprep.subr.mxu0 0.0
          %307 = vmatpush1.msra.mxu0 0.0
          %308 = vmatprep.subr.mxu0 0.0
          %309 = vmatpush1.msra.mxu0 0.0
          %310 = vmatprep.subr.mxu0 0.0
          %311 = vmatpush1.msra.mxu0 0.0
          %312 = vmatprep.subr.mxu0 0.0
          %313 = vmatpush1.msra.mxu0 0.0
          %314 = vmatprep.subr.mxu0 0.0
          %315 = vmatpush1.msra.mxu0 0.0
          %316 = vmatprep.subr.mxu0 0.0
          %317 = vmatpush1.msra.mxu0 0.0
          %318 = vmatprep.subr.mxu0 0.0
          %319 = vmatpush1.msra.mxu0 0.0
          %320 = vmatprep.mubr.f32.mxu0 0.0
          %321 = vmatmul.mubr.f32.gmra.mrb[0].mxu0 %v251
          %v322 = vpop.f32.mrb[0].mxu0
          %v323 = vadd.f32 %v248, %v322
          %v324 = vpop.f32.mrb[0].mxu0
          %325 = vmatprep.mubr.f32.mxu0 0.0
          %326 = vmatmul.mubr.f32.gmra.mrb[0].mxu0 %v254
          %v327 = vpop.f32.mrb[0].mxu0
          %v328 = vadd.f32 %v248, %v327
          %v329 = vpop.f32.mrb[0].mxu0
          %330 = vdwg.mxu0
          %331 = vst [vmem:[#allocation8] sm:$0xff] %v323
          %332 = vst [vmem:[#allocation8 + $0x8] sm:$0xff] %v328
        $region48: #{tpu_custom_call.1} parent=31 // pred_fallthru
          _
        // Predicated region
        $region49: #{tpu_custom_call.1} parent=31 // pred_check
          %p333 = pneg %p119
        $region50: #{tpu_custom_call.1} parent=31 // pred_check_branch
          %335 = sbr.rel (%p333) target = $region52
        $region51: #{tpu_custom_call.1} parent=31 // pred_region
          %s336 = smul.u32 2, %s23
          %s338 = ssub.s32 256, 256
          %339 = vsyncadd [#allocation5], %s338
          %s340 = smul.addr %s336, 128
          %s341 = scalar_lea.hbm %s3, %s340
          %s342 = sshll.u32 [#allocation8], 4
          %s343 = int_to_ptr.vmem [resolvable:$true] %s342
          %348 = dma.vmem_to_hbm [thread:$0]  %s343, 256, %s341, [#allocation5], 128, 128, 8
        $region52: #{tpu_custom_call.1} parent=31 // pred_fallthru
          _
        // Predicated region
        $region53: #{tpu_custom_call.1} parent=31 // pred_check
          %p349 = pneg %p119
        $region54: #{tpu_custom_call.1} parent=31 // pred_check_branch
          %351 = sbr.rel (%p349) target = $region56
        $region55: #{tpu_custom_call.1} parent=31 // pred_region
          %352 = dma.done [#allocation5], 256
        $region56: #{tpu_custom_call.1} parent=31 // pred_fallthru
          _
      $region32: #{tpu_custom_call.1} parent=5 // pred_fallthru
        _
      %p353 = scmp.le.s32.totalorder 2, %s14
      // Predicated region
      $region57: #{tpu_custom_call.1} parent=5 // pred_check
        %p354 = pneg %p353
      $region58: #{tpu_custom_call.1} parent=5 // pred_check_branch
        %356 = sbr.rel (%p354) target = $region60
      $region59: #{tpu_custom_call.1} parent=5 // pred_region
        %s357 = ssub.s32 %s14, 2
      $region60: #{tpu_custom_call.1} parent=5 // pred_fallthru
        _
    $region6: #{tpu_custom_call.1} parent=1 // loop_footer
      %s18 = sadd.s32 1, %s14
    $region7: #{tpu_custom_call.1} parent=1 // loop_footer_branch
      %13 = sbr.rel target = $region3
    $region8: #{tpu_custom_call.1} parent=1 // loop_exit
      _
    %358 = vsyncpa [#allocation4], 1
    %s359 = scalar_lea.sflag [#allocation4], 1
    %360 = vsyncpa %s359, 1
    %361 = vsyncpa [#allocation7], 1
    %362 = vsyncpa [#allocation5], 1
    %s363 = scalar_lea.sflag [#allocation5], 1
    %364 = vsyncpa %s363, 1

</llo_original>
